<compile_context>
chip_gen: v5e
topology: v5e:2x2
jax: 0.10.0
libtpu: 0.0.40
codegen_flags: <defaults>
</compile_context>

<pallas_src>
import jax
import jax.numpy as jnp
from jax.experimental import pallas as pl
from jax.experimental.pallas import tpu as pltpu


def _linear_kernel(x_ref, w_ref, b_ref, o_ref):
    # x_ref: (tm, tk)   w_ref: (tk, tn)   b_ref: (1, tn)   o_ref: (tm, tn) f32
    # The output block index (i, j) is constant across the trailing K axis, so
    # o_ref stays resident in VMEM: seed it with the bias at k == 0 and
    # accumulate the partial matmuls directly into it.
    @pl.when(pl.program_id(2) == 0)
    def _init():
        o_ref[...] = jnp.broadcast_to(b_ref[...].astype(o_ref.dtype), o_ref.shape)

    o_ref[...] += jnp.dot(x_ref[...], w_ref[...],
                          preferred_element_type=jnp.float32)


def _round_up(v, mult):
    return ((v + mult - 1) // mult) * mult


def probabilistic_memory_compression(x, weight, bias, *,
                                     tile_m=None, tile_n=None, tile_k=None,
                                     compute_dtype=None):
    """Forward pass: compressed = x @ weight.T + bias.

    Args:
      x:      (batch, seq, input_dim)
      weight: (output_dim, input_dim)   (PyTorch nn.Linear convention)
      bias:   (output_dim,)
      compute_dtype: optional dtype (e.g. jnp.bfloat16) to cast x / weight to
        before the matmul; accumulation stays f32.
    Returns:
      (batch, seq, output_dim) array with x.dtype.
    """
    batch, seq, d_in = x.shape
    d_out, d_in_w = weight.shape
    assert d_in_w == d_in, "weight second dim must match x last dim"
    m = batch * seq

    in_dtype = jnp.dtype(compute_dtype) if compute_dtype is not None else jnp.dtype(x.dtype)
    itemsize = in_dtype.itemsize

    # ---- K tile: an exact divisor of d_in (so K never overhangs / needs pad),
    # or a single full-extent block via the full-array-dim exception.
    if tile_k is None:
        if d_in % 128 == 0:
            tile_k = 128
            for cand in (2048, 1024, 512, 256, 128):
                if d_in % cand == 0:
                    tile_k = cand
                    break
        else:
            tile_k = d_in                       # full-extent K block, no padding
    assert tile_k == d_in or d_in % tile_k == 0, "K must tile exactly"

    # ---- N tile: one block whenever d_out is modest -> x read from HBM once.
    if tile_n is None:
        if d_out <= 512 or d_out % 128 != 0:
            tile_n = d_out                      # full-extent N block, no padding
        else:
            tile_n = 128
            for cand in (512, 384, 256, 128):
                if d_out % cand == 0:
                    tile_n = cand
                    break
    assert tile_n == d_out or d_out % tile_n == 0, "N must tile exactly"

    # ---- M tile: 512 rows by default; full-extent block for small M.
    # TODO(synk): on v7x (2 TensorCores) split small M into >=2 blocks so the
    # second core gets work; on single-TC v5e/v6e that split only adds overhead.
    if tile_m is None:
        tile_m = 512
    if m <= tile_m:
        tile_m = m                              # full-extent M block, no overhang
    else:
        tile_m = _round_up(int(tile_m), 8)

    # ---- keep the double-buffered working set under ~24 MiB (safe on v7x's
    # 64 MiB physical VMEM; well within v5e/v6e's 128 MiB).
    def _working_set(tm):
        return (2 * (tm * tile_k + tile_k * tile_n + tile_n) * itemsize
                + 2 * tm * tile_n * 4)
    budget = 24 * 1024 * 1024
    while _working_set(tile_m) > budget and tile_m > 8:
        tile_m = max(8, _round_up(tile_m // 2, 8))
    # TODO(synk): if d_in and d_out are both huge and non-128-divisible the
    # full-extent blocks can still exceed the budget; add a padded fallback.

    grid_m = pl.cdiv(m, tile_m)
    grid_n = pl.cdiv(d_out, tile_n)
    grid_k = pl.cdiv(d_in, tile_k)

    x2 = x.reshape(m, d_in)
    w_t = weight.T                              # (d_in, d_out): one-time small transpose
    b2 = bias.reshape(1, d_out)
    if compute_dtype is not None:
        x2 = x2.astype(compute_dtype)
        w_t = w_t.astype(compute_dtype)

    cost = pl.CostEstimate(
        flops=2 * m * d_in * d_out,
        transcendentals=0,
        bytes_accessed=int(itemsize * (grid_n * m * d_in + grid_m * d_in * d_out)
                           + 4 * (m * d_out + d_out)),
    )

    out = pl.pallas_call(
        _linear_kernel,
        out_shape=jax.ShapeDtypeStruct((m, d_out), jnp.float32),
        grid_spec=pltpu.PrefetchScalarGridSpec(
            num_scalar_prefetch=0,
            grid=(grid_m, grid_n, grid_k),
            in_specs=[
                pl.BlockSpec((tile_m, tile_k), lambda i, j, k: (i, k)),   # x
                pl.BlockSpec((tile_k, tile_n), lambda i, j, k: (k, j)),   # weight.T
                pl.BlockSpec((1, tile_n), lambda i, j, k: (0, j)),        # bias
            ],
            out_specs=pl.BlockSpec((tile_m, tile_n), lambda i, j, k: (i, j)),
        ),
        compiler_params=pltpu.CompilerParams(
            dimension_semantics=("parallel", "parallel", "arbitrary"),
            vmem_limit_bytes=32 * 1024 * 1024,
        ),
        cost_estimate=cost,
    )(x2, w_t, b2)

    return out.reshape(batch, seq, d_out).astype(x.dtype)


if __name__ == "__main__":
    # Small shapes consistent with the module's forward: (batch, seq, input_dim)
    batch, seq, input_dim, output_dim = 2, 8, 32, 16

    key = jax.random.PRNGKey(0)
    kx, kw, kb = jax.random.split(key, 3)

    x = jax.random.normal(kx, (batch, seq, input_dim), dtype=jnp.float32)
    # Deterministic parameter init (mimicking nn.Linear's uniform(-1/sqrt(fan_in), +))
    bound = 1.0 / jnp.sqrt(jnp.float32(input_dim))
    weight = jax.random.uniform(kw, (output_dim, input_dim),
                                minval=-bound, maxval=bound, dtype=jnp.float32)
    bias = jax.random.uniform(kb, (output_dim,),
                              minval=-bound, maxval=bound, dtype=jnp.float32)

    out = probabilistic_memory_compression(x, weight, bias)
    out = jax.block_until_ready(out)

    # Cross-check against plain JAX reference
    ref = jnp.einsum("bsd,od->bso", x, weight) + bias
    assert out.shape == (batch, seq, output_dim)
    assert jnp.allclose(out, ref, atol=1e-5, rtol=1e-5)

    print("KERNEL_OK")
</pallas_src>

<mosaic_0001>
module attributes {stable_mosaic.version = 11 : i64} {
  func.func @_linear_kernel(%arg0: i32, %arg1: i32, %arg2: i32, %arg3: memref<16x32xf32, #tpu.memory_space<vmem>>, %arg4: memref<32x16xf32, #tpu.memory_space<vmem>>, %arg5: memref<1x16xf32, #tpu.memory_space<vmem>>, %arg6: memref<16x16xf32, #tpu.memory_space<vmem>>) attributes {dimension_semantics = [#tpu.dimension_semantics<parallel>, #tpu.dimension_semantics<parallel>, #tpu.dimension_semantics<arbitrary>], iteration_bounds = array<i64: 1, 1, 1>, scalar_prefetch = 0 : i64, scratch_operands = 0 : i64, tpu.core_type = #tpu.core_type<tc>, window_params = [{transform_indices = @transform_0, window_bounds = array<i64: 16, 32>}, {transform_indices = @transform_1, window_bounds = array<i64: 32, 16>}, {transform_indices = @transform_2, window_bounds = array<i64: 1, 16>}, {transform_indices = @transform_3, window_bounds = array<i64: 16, 16>}]} {
    %c0_i32 = arith.constant 0 : i32
    %0 = arith.cmpi eq, %arg2, %c0_i32 : i32
    %1 = arith.extui %0 : i1 to i32
    %c0_i32_0 = arith.constant 0 : i32
    %2 = arith.cmpi ne, %1, %c0_i32_0 : i32
    scf.if %2 {
      %c0_8 = arith.constant 0 : index
      %c0_9 = arith.constant 0 : index
      %9 = vector.load %arg5[%c0_8, %c0_9] : memref<1x16xf32, #tpu.memory_space<vmem>>, vector<1x16xf32>
      %10 = vector.shape_cast %9 : vector<1x16xf32> to vector<1x16xf32>
      %11 = vector.broadcast %10 : vector<1x16xf32> to vector<16x16xf32>
      %c0_10 = arith.constant 0 : index
      %c0_11 = arith.constant 0 : index
      %12 = vector.load %arg6[%c0_10, %c0_11] : memref<16x16xf32, #tpu.memory_space<vmem>>, vector<16x16xf32>
      tpu.vector_store %arg6[%c0_10, %c0_11], %11 {strides = array<i32>} : memref<16x16xf32, #tpu.memory_space<vmem>>, vector<16x16xf32>,
    } else {
    }
    %c0 = arith.constant 0 : index
    %c0_1 = arith.constant 0 : index
    %3 = vector.load %arg6[%c0, %c0_1] : memref<16x16xf32, #tpu.memory_space<vmem>>, vector<16x16xf32>
    %c0_2 = arith.constant 0 : index
    %c0_3 = arith.constant 0 : index
    %4 = vector.load %arg3[%c0_2, %c0_3] : memref<16x32xf32, #tpu.memory_space<vmem>>, vector<16x32xf32>
    %c0_4 = arith.constant 0 : index
    %c0_5 = arith.constant 0 : index
    %5 = vector.load %arg4[%c0_4, %c0_5] : memref<32x16xf32, #tpu.memory_space<vmem>>, vector<32x16xf32>
    %cst = arith.constant dense<0.000000e+00> : vector<16x16xf32>
    %6 = tpu.matmul %4, %5, %cst {dimension_numbers = #tpu.dot_dimension_numbers<[1], [0], [0], [1], [0, 0, 1, 1], [], []>} : vector<16x32xf32>, vector<32x16xf32>, vector<16x16xf32> -> vector<16x16xf32>
    %7 = arith.addf %3, %6 : vector<16x16xf32>
    %c0_6 = arith.constant 0 : index
    %c0_7 = arith.constant 0 : index
    %8 = vector.load %arg6[%c0_6, %c0_7] : memref<16x16xf32, #tpu.memory_space<vmem>>, vector<16x16xf32>
    tpu.vector_store %arg6[%c0_6, %c0_7], %7 {strides = array<i32>} : memref<16x16xf32, #tpu.memory_space<vmem>>, vector<16x16xf32>,
    return
  }
  func.func @transform_0(%arg0: i32, %arg1: i32, %arg2: i32) -> (i32, i32) {
    %c0_i32 = arith.constant 0 : i32
    return %arg0, %arg2 : i32, i32
  }
  func.func @transform_1(%arg0: i32, %arg1: i32, %arg2: i32) -> (i32, i32) {
    %c0_i32 = arith.constant 0 : i32
    return %arg2, %arg1 : i32, i32
  }
  func.func @transform_2(%arg0: i32, %arg1: i32, %arg2: i32) -> (i32, i32) {
    %c0_i32 = arith.constant 0 : i32
    %c0_i32_0 = arith.constant 0 : i32
    return %c0_i32, %arg1 : i32, i32
  }
  func.func @transform_3(%arg0: i32, %arg1: i32, %arg2: i32) -> (i32, i32) {
    %c0_i32 = arith.constant 0 : i32
    return %arg0, %arg1 : i32, i32
  }
}

</mosaic_0001>

<llo_original>
// kernel: tpu_custom_call.1
$region0: #{tpu_custom_call.1}
  #allocation0 [shape = 'u32[]', space=smem, size = 0x4, offset = 0x4, fixed_abs, tag = 'smem constant byte address 0x4 - core index']
  #allocation1 [shape = 'u32[72,128]{1,0:T(1,128)}', space=vmem, size = 0x9000, scoped, tag = 'internal scratch']
  %s0 = inlined_call_operand.vmem [shape: f32[16,32], index: 0, kind: input, shape index: {}]
  %s1 = inlined_call_operand.vmem [shape: f32[32,16], index: 1, kind: input, shape index: {}]
  %s2 = inlined_call_operand.vmem [shape: f32[1,16], index: 2, kind: input, shape index: {}]
  %s3 = inlined_call_operand.hbm [shape: f32[16,16], index: 3, kind: output, shape index: {}]
  %s4 = sld [smem:[#allocation0]]
  $region26: #{tpu_custom_call.1} parent=0
    _
  %s6 = ssub.s32 1, %s4
  %s7 = scalar_select 0, %s6, %s4
  $region1: #{tpu_custom_call.1} parent=0
    #allocation2 [shape = 'u8[8192]{0}', space=vmem, size = 0x2000, scoped, tag = 'output window, operand 0, single buffered']
    #allocation3 [shape = 's32[1]{0}', space=sflag, size = 0x4, scoped, tag = 'scoped memory for tpu_custom_call.1']
    %8 = vsyncpa [#allocation3], 0
    // Predicated region
    $region2: #{tpu_custom_call.1} parent=1 // pred_check
      _
    $region3: #{tpu_custom_call.1} parent=1 // pred_check_branch
      %10 = sbr.rel (0) target = $region5
    $region4: #{tpu_custom_call.1} parent=1 // pred_region
      _
    $region5: #{tpu_custom_call.1} parent=1 // pred_fallthru
      _
    // Predicated region
    $region6: #{tpu_custom_call.1} parent=1 // pred_check
      _
    $region7: #{tpu_custom_call.1} parent=1 // pred_check_branch
      %12 = sbr.rel (0) target = $region9
    $region8: #{tpu_custom_call.1} parent=1 // pred_region
      _
    $region9: #{tpu_custom_call.1} parent=1 // pred_fallthru
      _
    // Predicated region
    $region10: #{tpu_custom_call.1} parent=1 // pred_check
      _
    $region11: #{tpu_custom_call.1} parent=1 // pred_check_branch
      %14 = sbr.rel (0) target = $region13
    $region12: #{tpu_custom_call.1} parent=1 // pred_region
      _
    $region13: #{tpu_custom_call.1} parent=1 // pred_fallthru
      _
    %p15 = scmp.eq.s32.totalorder 0, 0
    // Predicated region
    $region14: #{tpu_custom_call.1} parent=1 // pred_check
      %p16 = pneg %p15
    $region15: #{tpu_custom_call.1} parent=1 // pred_check_branch
      %18 = sbr.rel (%p16) target = $region17
    $region16: #{tpu_custom_call.1} parent=1 // pred_region
      %v19 = vld [vmem:[%s2] sm:$0x1]
      %v21 = vperm.slane %v19, 0
      %vm23 = vcmask 130048
      %24 = vst.msk [vmem:[#allocation2] sm:$0xff] %vm23, %v21
      %25 = vst.msk [vmem:[#allocation2 + $0x8] sm:$0xff] %vm23, %v21
    $region17: #{tpu_custom_call.1} parent=1 // pred_fallthru
      _
    %v26 = vld [vmem:[#allocation2] sm:$0xff]
    %v27 = vld [vmem:[#allocation2 + $0x8] sm:$0xff]
    %v28 = vld [vmem:[%s0] sm:$0xff]
    %v29 = vld [vmem:[%s0 + $0x8] sm:$0xff]
    %v30 = vld [vmem:[%s1] sm:$0xff]
    %v31 = vld [vmem:[%s1 + $0x8] sm:$0xff]
    %v32 = vld [vmem:[%s1 + $0x10] sm:$0xff]
    %v33 = vld [vmem:[%s1 + $0x18] sm:$0xff]
    %vm34 = vcmask 261120
    %v36 = vsel %vm34, %v28, 0
    %v39 = vsel %vm34, %v29, 0
    %41 = vmatpush.msra.mxu0 0.0
    %42 = vmatpush.msra.mxu0 0.0
    %43 = vmatpush.msra.mxu0 0.0
    %44 = vmatpush.msra.mxu0 0.0
    %45 = vmatpush.msra.mxu0 0.0
    %46 = vmatpush.msra.mxu0 0.0
    %47 = vmatpush.msra.mxu0 0.0
    %48 = vmatpush.msra.mxu0 0.0
    %49 = vmatpush.msra.mxu0 0.0
    %50 = vmatpush.msra.mxu0 0.0
    %51 = vmatpush.msra.mxu0 0.0
    %52 = vmatpush.msra.mxu0 0.0
    %53 = vmatpush.msra.mxu0 %v33
    %54 = vmatpush.msra.mxu0 %v32
    %55 = vmatpush.msra.mxu0 %v31
    %56 = vmatpush.msra.mxu0 %v30
    %57 = vmatmul.f32.gmra.mxu0 %v36
    %v58 = vpop.f32.mrf.mxu0
    %v59 = vadd.f32 0.0, %v58
    %60 = vmatmul.f32.gmra.mxu0 %v39
    %v61 = vpop.f32.mrf.mxu0
    %v62 = vadd.f32 0.0, %v61
    %63 = vdwg.mxu0
    %v64 = vadd.f32 %v26, %v59
    %v65 = vadd.f32 %v27, %v62
    %vm66 = vcmask 130048
    %67 = vst.msk [vmem:[#allocation2] sm:$0xff] %vm66, %v64
    %68 = vst.msk [vmem:[#allocation2 + $0x8] sm:$0xff] %vm66, %v65
    // Predicated region
    $region18: #{tpu_custom_call.1} parent=1 // pred_check
      _
    $region19: #{tpu_custom_call.1} parent=1 // pred_check_branch
      %70 = sbr.rel (0) target = $region21
    $region20: #{tpu_custom_call.1} parent=1 // pred_region
      %72 = vsyncadd [#allocation3], 0
      %s73 = sshll.u32 [#allocation2], 4
      %s74 = int_to_ptr.vmem [resolvable:$true] %s73
      %s75 = sshll.u32 %s3, 4
      %s76 = int_to_ptr.hbm [resolvable:$true] %s75
      %81 = dma.vmem_to_hbm [thread:$0]  %s74, 256, %s76, [#allocation3], 128, 128, 8
    $region21: #{tpu_custom_call.1} parent=1 // pred_fallthru
      _
    // Predicated region
    $region22: #{tpu_custom_call.1} parent=1 // pred_check
      _
    $region23: #{tpu_custom_call.1} parent=1 // pred_check_branch
      %83 = sbr.rel (0) target = $region25
    $region24: #{tpu_custom_call.1} parent=1 // pred_region
      %85 = dma.done [#allocation3], 256
    $region25: #{tpu_custom_call.1} parent=1 // pred_fallthru
      _
    %86 = vsyncpa [#allocation3], 1

</llo_original>
